<compile_context>
chip_gen: v7x
topology: tpu7x:2x2x1
jax: 0.10.0
libtpu: 0.0.40
codegen_flags: <defaults>
</compile_context>

<pallas_src>
import jax
import jax.numpy as jnp
from jax.experimental import pallas as pl
from jax.experimental.pallas import tpu as pltpu

N_HIDDEN = 10
FOLD = 8  # samples folded into the lane axis: FOLD * dx(16) = 128 lanes


def dvae_kernel(x_ref, w1_ref, b1_ref, w2_ref, b2_ref, w3_ref, b3_ref,
                diag_aw_ref, w_off_ref, h_ref, noise_ref, bw_ref,
                dec1_ref, dec2_ref, mu_ref):
    # ---- encode: relu(fc1) -> relu(fc2) -> fc3 (block-diag folded weights) ----
    x = x_ref[...]
    h1 = jnp.maximum(
        jnp.dot(x, w1_ref[...], preferred_element_type=jnp.float32) + b1_ref[...],
        0.0)
    h2 = jnp.maximum(
        jnp.dot(h1, w2_ref[...], preferred_element_type=jnp.float32) + b2_ref[...],
        0.0)
    zt1 = jnp.dot(h2, w3_ref[...], preferred_element_type=jnp.float32) + b3_ref[...]

    # ---- plrnn_step: mu = zt1 @ diag(AW) + relu(zt1) @ (AW - diag(AW)) + h ----
    # diag(AW) is a tiled (1, FOLD*dz) row so the diagonal "matmul" is a free
    # VPU elementwise multiply; W_off is already block-diagonal-folded.
    mu = (zt1 * diag_aw_ref[...]
          + jnp.dot(jnp.maximum(zt1, 0.0), w_off_ref[...],
                    preferred_element_type=jnp.float32)
          + h_ref[...])

    # ---- reparametrize: zt2 = eps*std + mu; eps*exp(0.5*logS) precomputed and
    # tiled in the wrapper (single row broadcast, matching randn_like(std)).
    zt2 = noise_ref[...] + mu

    # ---- decode: relu(z @ B^T) twice, back-to-back so the MXU holds bw. ----
    bw = bw_ref[...]
    dec1_ref[...] = jnp.maximum(
        jnp.dot(zt1, bw, preferred_element_type=jnp.float32), 0.0)
    dec2_ref[...] = jnp.maximum(
        jnp.dot(zt2, bw, preferred_element_type=jnp.float32), 0.0)
    mu_ref[...] = mu


def dvae_forward(x, params, eps, *, tile_n=16384):
    """Returns (decode(zt1), decode(zt2), mu, logS) exactly like the PyTorch
    module's forward.  `x` may be any shape whose size is a multiple of dx."""
    dx = params["w1"].shape[0]
    nh = params["w1"].shape[1]
    dz = params["aw"].shape[0]
    xf = x.reshape(-1, dx)                       # == x.view(-1, n_input)
    n = xf.shape[0]

    # ---- one-time constant prep (hoisted out of the kernel) ----
    eye = jnp.eye(FOLD, dtype=jnp.float32)
    aw = params["aw"]
    diag_aw = jnp.diag(aw).reshape(1, dz)
    w_off = aw - jnp.diag(jnp.diag(aw))
    noise = eps * jnp.exp(0.5 * params["logS"])  # eps * std, single (1, dz) row

    # Block-diagonal lane-folded weights (kron with eye(FOLD)) and tiled rows.
    w1_blk = jnp.kron(eye, params["w1"])         # (FOLD*dx, FOLD*nh)
    w2_blk = jnp.kron(eye, params["w2"])         # (FOLD*nh, FOLD*nh)
    w3_blk = jnp.kron(eye, params["w3"])         # (FOLD*nh, FOLD*dz)
    w_off_blk = jnp.kron(eye, w_off)             # (FOLD*dz, FOLD*dz)
    bw_blk = jnp.kron(eye, params["bw"])         # (FOLD*dz, FOLD*dx)
    b1_blk = jnp.tile(params["b1"], (1, FOLD))
    b2_blk = jnp.tile(params["b2"], (1, FOLD))
    b3_blk = jnp.tile(params["b3"], (1, FOLD))
    diag_blk = jnp.tile(diag_aw, (1, FOLD))
    h_blk = jnp.tile(params["h"], (1, FOLD))
    noise_blk = jnp.tile(noise, (1, FOLD))

    dxf, nhf, dzf = FOLD * dx, FOLD * nh, FOLD * dz

    # ---- batch tiling in folded rows (8 samples per row) ----
    m = -(-n // FOLD)                             # folded rows needed
    tile_m = max(8, (max(tile_n // FOLD, 8) // 8) * 8)
    tile_m = min(tile_m, ((m + 7) // 8) * 8)      # don't over-pad tiny inputs
    if m > 8:
        # keep >= 2 grid steps so the parallel axis can shard across v7x's TCs
        half = ((-(-m // 2)) + 7) // 8 * 8
        tile_m = min(tile_m, half)
    tile_m = max(8, tile_m)
    m_pad = -(-m // tile_m) * tile_m
    n_pad = m_pad * FOLD
    if n_pad != n:
        # Padded tail rows run relu(bias)-style garbage and are sliced off
        # below - correct, just a little wasted work on the last tile.
        xf = jnp.pad(xf, ((0, n_pad - n), (0, 0)))
    xb = xf.reshape(m_pad, dxf)                   # free row-major view
    grid = (m_pad // tile_m,)

    def const_spec(shape):
        # Whole (tiny) array resident in VMEM across all grid steps.
        return pl.BlockSpec(shape, lambda i: (0, 0))

    in_specs = [
        pl.BlockSpec((tile_m, dxf), lambda i: (i, 0)),   # folded x tile
        const_spec((dxf, nhf)), const_spec((1, nhf)),    # fc1 weight / bias
        const_spec((nhf, nhf)), const_spec((1, nhf)),    # fc2 weight / bias
        const_spec((nhf, dzf)), const_spec((1, dzf)),    # fc3 weight / bias
        const_spec((1, dzf)),                            # diag(AW) tiled
        const_spec((dzf, dzf)),                          # W off-diag block-diag
        const_spec((1, dzf)),                            # h tiled
        const_spec((1, dzf)),                            # eps*std tiled
        const_spec((dzf, dxf)),                          # B.weight.T block-diag
    ]
    out_specs = (
        pl.BlockSpec((tile_m, dxf), lambda i: (i, 0)),   # decode(zt1) folded
        pl.BlockSpec((tile_m, dxf), lambda i: (i, 0)),   # decode(zt2) folded
        pl.BlockSpec((tile_m, dzf), lambda i: (i, 0)),   # mu folded
    )

    flops = 2 * m_pad * (dxf * nhf + nhf * nhf + nhf * dzf
                         + dzf * dzf + 2 * dzf * dxf) + 8 * m_pad * dzf
    bytes_accessed = 4 * (m_pad * (3 * dxf + dzf)
                          + dxf * nhf + nhf * nhf + nhf * dzf
                          + dzf * dzf + dzf * dxf + 2 * nhf + 4 * dzf)

    dec1, dec2, mu = pl.pallas_call(
        dvae_kernel,
        grid=grid,
        in_specs=in_specs,
        out_specs=out_specs,
        out_shape=(
            jax.ShapeDtypeStruct((m_pad, dxf), jnp.float32),
            jax.ShapeDtypeStruct((m_pad, dxf), jnp.float32),
            jax.ShapeDtypeStruct((m_pad, dzf), jnp.float32),
        ),
        compiler_params=pltpu.CompilerParams(
            # Batch axis is embarrassingly parallel (megacore sharding on v7x).
            dimension_semantics=("parallel",),
            # 48 MiB leaves headroom inside v7x's 64 MiB physical VMEM while
            # allowing large tiles; v5e/v6e have 128 MiB so this is safe.
            vmem_limit_bytes=48 * 1024 * 1024,
        ),
        cost_estimate=pl.CostEstimate(
            flops=flops, transcendentals=0, bytes_accessed=bytes_accessed),
    )(xb, w1_blk, b1_blk, w2_blk, b2_blk, w3_blk, b3_blk,
      diag_blk, w_off_blk, h_blk, noise_blk, bw_blk)

    # Unfold (free row-major views) and drop the padded tail.
    dec1 = dec1.reshape(n_pad, dx)[:n]
    dec2 = dec2.reshape(n_pad, dx)[:n]
    mu = mu.reshape(n_pad, dz)[:n]
    return dec1, dec2, mu, params["logS"]


def make_params(key, dx, dz, n_hidden=N_HIDDEN):
    ks = jax.random.split(key, 10)
    # Linear weights stored already transposed: (in_features, out_features).
    return {
        "w1": jax.random.normal(ks[0], (dx, n_hidden), jnp.float32) * 0.1,
        "b1": jax.random.normal(ks[1], (1, n_hidden), jnp.float32) * 0.1,
        "w2": jax.random.normal(ks[2], (n_hidden, n_hidden), jnp.float32) * 0.1,
        "b2": jax.random.normal(ks[3], (1, n_hidden), jnp.float32) * 0.1,
        "w3": jax.random.normal(ks[4], (n_hidden, dz), jnp.float32) * 0.1,
        "b3": jax.random.normal(ks[5], (1, dz), jnp.float32) * 0.1,
        "aw": jax.random.normal(ks[6], (dz, dz), jnp.float32) * 0.1,
        "h": jax.random.normal(ks[7], (1, dz), jnp.float32) * 0.1,
        "logS": jax.random.normal(ks[8], (1, dz), jnp.float32) * 0.1,
        # B.weight has shape (dx, dz); we store its transpose (dz, dx).
        "bw": jax.random.normal(ks[9], (dz, dx), jnp.float32) * 0.1,
    }


def dvae_reference(x, params, eps):
    """Pure-JAX reference mirroring the PyTorch forward, for verification."""
    dx = params["w1"].shape[0]
    xf = x.reshape(-1, dx)
    h1 = jax.nn.relu(xf @ params["w1"] + params["b1"])
    h2 = jax.nn.relu(h1 @ params["w2"] + params["b2"])
    zt1 = h2 @ params["w3"] + params["b3"]
    A = jnp.diag(jnp.diag(params["aw"]))
    W = params["aw"] - A
    mu = zt1 @ A + jax.nn.relu(zt1) @ W + params["h"]
    std = jnp.exp(0.5 * params["logS"])
    zt2 = eps * std + mu
    dec1 = jax.nn.relu(zt1 @ params["bw"])
    dec2 = jax.nn.relu(zt2 @ params["bw"])
    return dec1, dec2, mu, params["logS"]


if __name__ == "__main__":
    key = jax.random.PRNGKey(0)
    k_par, k_x, k_eps, k_x2 = jax.random.split(key, 4)

    dx, dz = 16, 8
    params = make_params(k_par, dx, dz)

    # eps = randn_like(std); std has shape (1, dz) -> single noise row broadcast
    # across the batch (matches the PyTorch module's reparametrize semantics).
    eps = jax.random.normal(k_eps, (1, dz), jnp.float32)

    # Small case: x of shape (batch=2, channels=4, dx=16) -> 8 rows = 1 folded row.
    x = jax.random.normal(k_x, (2, 4, dx), jnp.float32)
    outs = jax.block_until_ready(dvae_forward(x, params, eps))
    refs = dvae_reference(x, params, eps)
    for o, r in zip(outs, refs):
        assert o.shape == r.shape and o.dtype == r.dtype
        assert jnp.allclose(o, r, atol=1e-5, rtol=1e-5)

    # Ragged / multi-step-grid case: 300 rows with a small tile -> grid of 3,
    # zero-padded tail sliced off in the wrapper.
    x2 = jax.random.normal(k_x2, (300, dx), jnp.float32)
    outs2 = jax.block_until_ready(dvae_forward(x2, params, eps, tile_n=128))
    refs2 = dvae_reference(x2, params, eps)
    for o, r in zip(outs2, refs2):
        assert o.shape == r.shape and o.dtype == r.dtype
        assert jnp.allclose(o, r, atol=1e-5, rtol=1e-5)

    # Same ragged case with the default (large) tile: exercises the >=2-step
    # grid cap so the parallel axis still splits across cores.
    outs3 = jax.block_until_ready(dvae_forward(x2, params, eps))
    for o, r in zip(outs3, refs2):
        assert o.shape == r.shape and o.dtype == r.dtype
        assert jnp.allclose(o, r, atol=1e-5, rtol=1e-5)

    print("KERNEL_OK")
</pallas_src>

<mosaic_0001>
module attributes {stable_mosaic.version = 11 : i64} {
  func.func @dvae_kernel(%arg0: i32, %arg1: memref<8x128xf32, #tpu.memory_space<vmem>>, %arg2: memref<128x80xf32, #tpu.memory_space<vmem>>, %arg3: memref<1x80xf32, #tpu.memory_space<vmem>>, %arg4: memref<80x80xf32, #tpu.memory_space<vmem>>, %arg5: memref<1x80xf32, #tpu.memory_space<vmem>>, %arg6: memref<80x64xf32, #tpu.memory_space<vmem>>, %arg7: memref<1x64xf32, #tpu.memory_space<vmem>>, %arg8: memref<1x64xf32, #tpu.memory_space<vmem>>, %arg9: memref<64x64xf32, #tpu.memory_space<vmem>>, %arg10: memref<1x64xf32, #tpu.memory_space<vmem>>, %arg11: memref<1x64xf32, #tpu.memory_space<vmem>>, %arg12: memref<64x128xf32, #tpu.memory_space<vmem>>, %arg13: memref<8x128xf32, #tpu.memory_space<vmem>>, %arg14: memref<8x128xf32, #tpu.memory_space<vmem>>, %arg15: memref<8x64xf32, #tpu.memory_space<vmem>>) attributes {dimension_semantics = [#tpu.dimension_semantics<parallel>], iteration_bounds = array<i64: 1>, scalar_prefetch = 0 : i64, scratch_operands = 0 : i64, tpu.core_type = #tpu.core_type<tc>, window_params = [{transform_indices = @transform_0, window_bounds = array<i64: 8, 128>}, {pipeline_mode = #tpu.pipeline_mode<synchronous>, transform_indices = @transform_1, window_bounds = array<i64: 128, 80>}, {pipeline_mode = #tpu.pipeline_mode<synchronous>, transform_indices = @transform_2, window_bounds = array<i64: 1, 80>}, {pipeline_mode = #tpu.pipeline_mode<synchronous>, transform_indices = @transform_3, window_bounds = array<i64: 80, 80>}, {pipeline_mode = #tpu.pipeline_mode<synchronous>, transform_indices = @transform_4, window_bounds = array<i64: 1, 80>}, {pipeline_mode = #tpu.pipeline_mode<synchronous>, transform_indices = @transform_5, window_bounds = array<i64: 80, 64>}, {pipeline_mode = #tpu.pipeline_mode<synchronous>, transform_indices = @transform_6, window_bounds = array<i64: 1, 64>}, {pipeline_mode = #tpu.pipeline_mode<synchronous>, transform_indices = @transform_7, window_bounds = array<i64: 1, 64>}, {pipeline_mode = #tpu.pipeline_mode<synchronous>, transform_indices = @transform_8, window_bounds = array<i64: 64, 64>}, {pipeline_mode = #tpu.pipeline_mode<synchronous>, transform_indices = @transform_9, window_bounds = array<i64: 1, 64>}, {pipeline_mode = #tpu.pipeline_mode<synchronous>, transform_indices = @transform_10, window_bounds = array<i64: 1, 64>}, {pipeline_mode = #tpu.pipeline_mode<synchronous>, transform_indices = @transform_11, window_bounds = array<i64: 64, 128>}, {transform_indices = @transform_12, window_bounds = array<i64: 8, 128>}, {transform_indices = @transform_13, window_bounds = array<i64: 8, 128>}, {transform_indices = @transform_14, window_bounds = array<i64: 8, 64>}]} {
    %c0 = arith.constant 0 : index
    %c0_0 = arith.constant 0 : index
    %0 = vector.load %arg1[%c0, %c0_0] : memref<8x128xf32, #tpu.memory_space<vmem>>, vector<8x128xf32>
    %c0_1 = arith.constant 0 : index
    %c0_2 = arith.constant 0 : index
    %1 = vector.load %arg2[%c0_1, %c0_2] : memref<128x80xf32, #tpu.memory_space<vmem>>, vector<128x80xf32>
    %cst = arith.constant dense<0.000000e+00> : vector<8x80xf32>
    %2 = tpu.matmul %0, %1, %cst {dimension_numbers = #tpu.dot_dimension_numbers<[1], [0], [0], [1], [0, 0, 1, 1], [], []>} : vector<8x128xf32>, vector<128x80xf32>, vector<8x80xf32> -> vector<8x80xf32>
    %c0_3 = arith.constant 0 : index
    %c0_4 = arith.constant 0 : index
    %3 = vector.load %arg3[%c0_3, %c0_4] : memref<1x80xf32, #tpu.memory_space<vmem>>, vector<1x80xf32>
    %4 = vector.broadcast %3 : vector<1x80xf32> to vector<8x80xf32>
    %5 = arith.addf %2, %4 : vector<8x80xf32>
    %cst_5 = arith.constant 0.000000e+00 : f32
    %6 = vector.broadcast %cst_5 : f32 to vector<8x80xf32>
    %7 = arith.maximumf %5, %6 : vector<8x80xf32>
    %c0_6 = arith.constant 0 : index
    %c0_7 = arith.constant 0 : index
    %8 = vector.load %arg4[%c0_6, %c0_7] : memref<80x80xf32, #tpu.memory_space<vmem>>, vector<80x80xf32>
    %cst_8 = arith.constant dense<0.000000e+00> : vector<8x80xf32>
    %9 = tpu.matmul %7, %8, %cst_8 {dimension_numbers = #tpu.dot_dimension_numbers<[1], [0], [0], [1], [0, 0, 1, 1], [], []>} : vector<8x80xf32>, vector<80x80xf32>, vector<8x80xf32> -> vector<8x80xf32>
    %c0_9 = arith.constant 0 : index
    %c0_10 = arith.constant 0 : index
    %10 = vector.load %arg5[%c0_9, %c0_10] : memref<1x80xf32, #tpu.memory_space<vmem>>, vector<1x80xf32>
    %11 = vector.broadcast %10 : vector<1x80xf32> to vector<8x80xf32>
    %12 = arith.addf %9, %11 : vector<8x80xf32>
    %cst_11 = arith.constant 0.000000e+00 : f32
    %13 = vector.broadcast %cst_11 : f32 to vector<8x80xf32>
    %14 = arith.maximumf %12, %13 : vector<8x80xf32>
    %c0_12 = arith.constant 0 : index
    %c0_13 = arith.constant 0 : index
    %15 = vector.load %arg6[%c0_12, %c0_13] : memref<80x64xf32, #tpu.memory_space<vmem>>, vector<80x64xf32>
    %cst_14 = arith.constant dense<0.000000e+00> : vector<8x64xf32>
    %16 = tpu.matmul %14, %15, %cst_14 {dimension_numbers = #tpu.dot_dimension_numbers<[1], [0], [0], [1], [0, 0, 1, 1], [], []>} : vector<8x80xf32>, vector<80x64xf32>, vector<8x64xf32> -> vector<8x64xf32>
    %c0_15 = arith.constant 0 : index
    %c0_16 = arith.constant 0 : index
    %17 = vector.load %arg7[%c0_15, %c0_16] : memref<1x64xf32, #tpu.memory_space<vmem>>, vector<1x64xf32>
    %18 = vector.broadcast %17 : vector<1x64xf32> to vector<8x64xf32>
    %19 = arith.addf %16, %18 : vector<8x64xf32>
    %c0_17 = arith.constant 0 : index
    %c0_18 = arith.constant 0 : index
    %20 = vector.load %arg8[%c0_17, %c0_18] : memref<1x64xf32, #tpu.memory_space<vmem>>, vector<1x64xf32>
    %21 = vector.broadcast %20 : vector<1x64xf32> to vector<8x64xf32>
    %22 = arith.mulf %19, %21 : vector<8x64xf32>
    %cst_19 = arith.constant 0.000000e+00 : f32
    %23 = vector.broadcast %cst_19 : f32 to vector<8x64xf32>
    %24 = arith.maximumf %19, %23 : vector<8x64xf32>
    %c0_20 = arith.constant 0 : index
    %c0_21 = arith.constant 0 : index
    %25 = vector.load %arg9[%c0_20, %c0_21] : memref<64x64xf32, #tpu.memory_space<vmem>>, vector<64x64xf32>
    %cst_22 = arith.constant dense<0.000000e+00> : vector<8x64xf32>
    %26 = tpu.matmul %24, %25, %cst_22 {dimension_numbers = #tpu.dot_dimension_numbers<[1], [0], [0], [1], [0, 0, 1, 1], [], []>} : vector<8x64xf32>, vector<64x64xf32>, vector<8x64xf32> -> vector<8x64xf32>
    %27 = arith.addf %22, %26 : vector<8x64xf32>
    %c0_23 = arith.constant 0 : index
    %c0_24 = arith.constant 0 : index
    %28 = vector.load %arg10[%c0_23, %c0_24] : memref<1x64xf32, #tpu.memory_space<vmem>>, vector<1x64xf32>
    %29 = vector.broadcast %28 : vector<1x64xf32> to vector<8x64xf32>
    %30 = arith.addf %27, %29 : vector<8x64xf32>
    %c0_25 = arith.constant 0 : index
    %c0_26 = arith.constant 0 : index
    %31 = vector.load %arg11[%c0_25, %c0_26] : memref<1x64xf32, #tpu.memory_space<vmem>>, vector<1x64xf32>
    %32 = vector.broadcast %31 : vector<1x64xf32> to vector<8x64xf32>
    %33 = arith.addf %32, %30 : vector<8x64xf32>
    %c0_27 = arith.constant 0 : index
    %c0_28 = arith.constant 0 : index
    %34 = vector.load %arg12[%c0_27, %c0_28] : memref<64x128xf32, #tpu.memory_space<vmem>>, vector<64x128xf32>
    %cst_29 = arith.constant dense<0.000000e+00> : vector<8x128xf32>
    %35 = tpu.matmul %19, %34, %cst_29 {dimension_numbers = #tpu.dot_dimension_numbers<[1], [0], [0], [1], [0, 0, 1, 1], [], []>} : vector<8x64xf32>, vector<64x128xf32>, vector<8x128xf32> -> vector<8x128xf32>
    %cst_30 = arith.constant 0.000000e+00 : f32
    %36 = vector.broadcast %cst_30 : f32 to vector<8x128xf32>
    %37 = arith.maximumf %35, %36 : vector<8x128xf32>
    %c0_31 = arith.constant 0 : index
    %c0_32 = arith.constant 0 : index
    %38 = vector.load %arg13[%c0_31, %c0_32] : memref<8x128xf32, #tpu.memory_space<vmem>>, vector<8x128xf32>
    tpu.vector_store %arg13[%c0_31, %c0_32], %37 {strides = array<i32>} : memref<8x128xf32, #tpu.memory_space<vmem>>, vector<8x128xf32>,
    %cst_33 = arith.constant dense<0.000000e+00> : vector<8x128xf32>
    %39 = tpu.matmul %33, %34, %cst_33 {dimension_numbers = #tpu.dot_dimension_numbers<[1], [0], [0], [1], [0, 0, 1, 1], [], []>} : vector<8x64xf32>, vector<64x128xf32>, vector<8x128xf32> -> vector<8x128xf32>
    %cst_34 = arith.constant 0.000000e+00 : f32
    %40 = vector.broadcast %cst_34 : f32 to vector<8x128xf32>
    %41 = arith.maximumf %39, %40 : vector<8x128xf32>
    %c0_35 = arith.constant 0 : index
    %c0_36 = arith.constant 0 : index
    %42 = vector.load %arg14[%c0_35, %c0_36] : memref<8x128xf32, #tpu.memory_space<vmem>>, vector<8x128xf32>
    tpu.vector_store %arg14[%c0_35, %c0_36], %41 {strides = array<i32>} : memref<8x128xf32, #tpu.memory_space<vmem>>, vector<8x128xf32>,
    %c0_37 = arith.constant 0 : index
    %c0_38 = arith.constant 0 : index
    %43 = vector.load %arg15[%c0_37, %c0_38] : memref<8x64xf32, #tpu.memory_space<vmem>>, vector<8x64xf32>
    tpu.vector_store %arg15[%c0_37, %c0_38], %30 {strides = array<i32>} : memref<8x64xf32, #tpu.memory_space<vmem>>, vector<8x64xf32>,
    return
  }
  func.func @transform_0(%arg0: i32) -> (i32, i32) {
    %c0_i32 = arith.constant 0 : i32
    %c0_i32_0 = arith.constant 0 : i32
    return %arg0, %c0_i32 : i32, i32
  }
  func.func @transform_1(%arg0: i32) -> (i32, i32) {
    %c0_i32 = arith.constant 0 : i32
    %c0_i32_0 = arith.constant 0 : i32
    %c0_i32_1 = arith.constant 0 : i32
    return %c0_i32, %c0_i32_0 : i32, i32
  }
  func.func @transform_2(%arg0: i32) -> (i32, i32) {
    %c0_i32 = arith.constant 0 : i32
    %c0_i32_0 = arith.constant 0 : i32
    %c0_i32_1 = arith.constant 0 : i32
    return %c0_i32, %c0_i32_0 : i32, i32
  }
  func.func @transform_3(%arg0: i32) -> (i32, i32) {
    %c0_i32 = arith.constant 0 : i32
    %c0_i32_0 = arith.constant 0 : i32
    %c0_i32_1 = arith.constant 0 : i32
    return %c0_i32, %c0_i32_0 : i32, i32
  }
  func.func @transform_4(%arg0: i32) -> (i32, i32) {
    %c0_i32 = arith.constant 0 : i32
    %c0_i32_0 = arith.constant 0 : i32
    %c0_i32_1 = arith.constant 0 : i32
    return %c0_i32, %c0_i32_0 : i32, i32
  }
  func.func @transform_5(%arg0: i32) -> (i32, i32) {
    %c0_i32 = arith.constant 0 : i32
    %c0_i32_0 = arith.constant 0 : i32
    %c0_i32_1 = arith.constant 0 : i32
    return %c0_i32, %c0_i32_0 : i32, i32
  }
  func.func @transform_6(%arg0: i32) -> (i32, i32) {
    %c0_i32 = arith.constant 0 : i32
    %c0_i32_0 = arith.constant 0 : i32
    %c0_i32_1 = arith.constant 0 : i32
    return %c0_i32, %c0_i32_0 : i32, i32
  }
  func.func @transform_7(%arg0: i32) -> (i32, i32) {
    %c0_i32 = arith.constant 0 : i32
    %c0_i32_0 = arith.constant 0 : i32
    %c0_i32_1 = arith.constant 0 : i32
    return %c0_i32, %c0_i32_0 : i32, i32
  }
  func.func @transform_8(%arg0: i32) -> (i32, i32) {
    %c0_i32 = arith.constant 0 : i32
    %c0_i32_0 = arith.constant 0 : i32
    %c0_i32_1 = arith.constant 0 : i32
    return %c0_i32, %c0_i32_0 : i32, i32
  }
  func.func @transform_9(%arg0: i32) -> (i32, i32) {
    %c0_i32 = arith.constant 0 : i32
    %c0_i32_0 = arith.constant 0 : i32
    %c0_i32_1 = arith.constant 0 : i32
    return %c0_i32, %c0_i32_0 : i32, i32
  }
  func.func @transform_10(%arg0: i32) -> (i32, i32) {
    %c0_i32 = arith.constant 0 : i32
    %c0_i32_0 = arith.constant 0 : i32
    %c0_i32_1 = arith.constant 0 : i32
    return %c0_i32, %c0_i32_0 : i32, i32
  }
  func.func @transform_11(%arg0: i32) -> (i32, i32) {
    %c0_i32 = arith.constant 0 : i32
    %c0_i32_0 = arith.constant 0 : i32
    %c0_i32_1 = arith.constant 0 : i32
    return %c0_i32, %c0_i32_0 : i32, i32
  }
  func.func @transform_12(%arg0: i32) -> (i32, i32) {
    %c0_i32 = arith.constant 0 : i32
    %c0_i32_0 = arith.constant 0 : i32
    return %arg0, %c0_i32 : i32, i32
  }
  func.func @transform_13(%arg0: i32) -> (i32, i32) {
    %c0_i32 = arith.constant 0 : i32
    %c0_i32_0 = arith.constant 0 : i32
    return %arg0, %c0_i32 : i32, i32
  }
  func.func @transform_14(%arg0: i32) -> (i32, i32) {
    %c0_i32 = arith.constant 0 : i32
    %c0_i32_0 = arith.constant 0 : i32
    return %arg0, %c0_i32 : i32, i32
  }
}

</mosaic_0001>

<llo_original>
// kernel: tpu_custom_call.1
$region0: #{tpu_custom_call.1}
  #allocation0 [shape = 'u32[]', space=smem, size = 0x4, offset = 0x4, fixed_abs, tag = 'smem constant byte address 0x4 - core index']
  #allocation1 [shape = 'u32[144,128]{1,0:T(1,128)}', space=vmem, size = 0x12000, scoped, tag = 'internal scratch']
  %s0 = inlined_call_operand.vmem [shape: f32[8,128], index: 0, kind: input, shape index: {}]
  %s1 = inlined_call_operand.vmem [shape: f32[128,80], index: 1, kind: input, shape index: {}]
  %s2 = inlined_call_operand.vmem [shape: f32[1,80], index: 2, kind: input, shape index: {}]
  %s3 = inlined_call_operand.vmem [shape: f32[80,80], index: 3, kind: input, shape index: {}]
  %s4 = inlined_call_operand.vmem [shape: f32[1,80], index: 4, kind: input, shape index: {}]
  %s5 = inlined_call_operand.vmem [shape: f32[80,64], index: 5, kind: input, shape index: {}]
  %s6 = inlined_call_operand.vmem [shape: f32[1,64], index: 6, kind: input, shape index: {}]
  %s7 = inlined_call_operand.vmem [shape: f32[1,64], index: 7, kind: input, shape index: {}]
  %s8 = inlined_call_operand.vmem [shape: f32[64,64], index: 8, kind: input, shape index: {}]
  %s9 = inlined_call_operand.vmem [shape: f32[1,64], index: 9, kind: input, shape index: {}]
  %s10 = inlined_call_operand.vmem [shape: f32[1,64], index: 10, kind: input, shape index: {}]
  %s11 = inlined_call_operand.vmem [shape: f32[64,128], index: 11, kind: input, shape index: {}]
  %s12 = inlined_call_operand.hbm [shape: f32[8,128], index: 12, kind: output, shape index: {0}]
  %s13 = inlined_call_operand.hbm [shape: f32[8,128], index: 13, kind: output, shape index: {1}]
  %s14 = inlined_call_operand.hbm [shape: f32[8,64], index: 14, kind: output, shape index: {2}]
  %15 = xla_tuple %s12, %s13, %s14
  %s16 = sld [smem:[#allocation0]]
  $region74: #{tpu_custom_call.1} parent=0
    _
  %s18 = ssub.s32 1, %s16
  %s19 = scalar_select 0, %s18, %s16
  $region1: #{tpu_custom_call.1} parent=0
    #allocation2 [shape = 'u8[4096]{0}', space=vmem, size = 0x1000, scoped, tag = 'output window, operand 0, single buffered']
    #allocation3 [shape = 's32[1]{0}', space=sflag, size = 0x4, scoped, tag = 'scoped memory for tpu_custom_call.1']
    #allocation4 [shape = 'u8[4096]{0}', space=vmem, size = 0x1000, scoped, tag = 'output window, operand 1, single buffered']
    #allocation5 [shape = 's32[1]{0}', space=sflag, size = 0x4, scoped, tag = 'scoped memory for tpu_custom_call.1']
    #allocation6 [shape = 'u8[4096]{0}', space=vmem, size = 0x1000, scoped, tag = 'output window, operand 2, single buffered']
    %20 = vsyncpa [#allocation3], 0
    %21 = vsyncpa [#allocation5], 0
    // Predicated region
    $region2: #{tpu_custom_call.1} parent=1 // pred_check
      _
    $region3: #{tpu_custom_call.1} parent=1 // pred_check_branch
      %23 = sbr.rel (0) target = $region5
    $region4: #{tpu_custom_call.1} parent=1 // pred_region
      _
    $region5: #{tpu_custom_call.1} parent=1 // pred_fallthru
      _
    // Predicated region
    $region6: #{tpu_custom_call.1} parent=1 // pred_check
      _
    $region7: #{tpu_custom_call.1} parent=1 // pred_check_branch
      %25 = sbr.rel (0) target = $region9
    $region8: #{tpu_custom_call.1} parent=1 // pred_region
      _
    $region9: #{tpu_custom_call.1} parent=1 // pred_fallthru
      _
    // Predicated region
    $region10: #{tpu_custom_call.1} parent=1 // pred_check
      _
    $region11: #{tpu_custom_call.1} parent=1 // pred_check_branch
      %27 = sbr.rel (0) target = $region13
    $region12: #{tpu_custom_call.1} parent=1 // pred_region
      _
    $region13: #{tpu_custom_call.1} parent=1 // pred_fallthru
      _
    // Predicated region
    $region14: #{tpu_custom_call.1} parent=1 // pred_check
      _
    $region15: #{tpu_custom_call.1} parent=1 // pred_check_branch
      %29 = sbr.rel (0) target = $region17
    $region16: #{tpu_custom_call.1} parent=1 // pred_region
      _
    $region17: #{tpu_custom_call.1} parent=1 // pred_fallthru
      _
    // Predicated region
    $region18: #{tpu_custom_call.1} parent=1 // pred_check
      _
    $region19: #{tpu_custom_call.1} parent=1 // pred_check_branch
      %31 = sbr.rel (0) target = $region21
    $region20: #{tpu_custom_call.1} parent=1 // pred_region
      _
    $region21: #{tpu_custom_call.1} parent=1 // pred_fallthru
      _
    // Predicated region
    $region22: #{tpu_custom_call.1} parent=1 // pred_check
      _
    $region23: #{tpu_custom_call.1} parent=1 // pred_check_branch
      %33 = sbr.rel (0) target = $region25
    $region24: #{tpu_custom_call.1} parent=1 // pred_region
      _
    $region25: #{tpu_custom_call.1} parent=1 // pred_fallthru
      _
    // Predicated region
    $region26: #{tpu_custom_call.1} parent=1 // pred_check
      _
    $region27: #{tpu_custom_call.1} parent=1 // pred_check_branch
      %35 = sbr.rel (0) target = $region29
    $region28: #{tpu_custom_call.1} parent=1 // pred_region
      _
    $region29: #{tpu_custom_call.1} parent=1 // pred_fallthru
      _
    // Predicated region
    $region30: #{tpu_custom_call.1} parent=1 // pred_check
      _
    $region31: #{tpu_custom_call.1} parent=1 // pred_check_branch
      %37 = sbr.rel (0) target = $region33
    $region32: #{tpu_custom_call.1} parent=1 // pred_region
      _
    $region33: #{tpu_custom_call.1} parent=1 // pred_fallthru
      _
    // Predicated region
    $region34: #{tpu_custom_call.1} parent=1 // pred_check
      _
    $region35: #{tpu_custom_call.1} parent=1 // pred_check_branch
      %39 = sbr.rel (0) target = $region37
    $region36: #{tpu_custom_call.1} parent=1 // pred_region
      _
    $region37: #{tpu_custom_call.1} parent=1 // pred_fallthru
      _
    // Predicated region
    $region38: #{tpu_custom_call.1} parent=1 // pred_check
      _
    $region39: #{tpu_custom_call.1} parent=1 // pred_check_branch
      %41 = sbr.rel (0) target = $region41
    $region40: #{tpu_custom_call.1} parent=1 // pred_region
      _
    $region41: #{tpu_custom_call.1} parent=1 // pred_fallthru
      _
    // Predicated region
    $region42: #{tpu_custom_call.1} parent=1 // pred_check
      _
    $region43: #{tpu_custom_call.1} parent=1 // pred_check_branch
      %43 = sbr.rel (0) target = $region45
    $region44: #{tpu_custom_call.1} parent=1 // pred_region
      _
    $region45: #{tpu_custom_call.1} parent=1 // pred_fallthru
      _
    // Predicated region
    $region46: #{tpu_custom_call.1} parent=1 // pred_check
      _
    $region47: #{tpu_custom_call.1} parent=1 // pred_check_branch
      %45 = sbr.rel (0) target = $region49
    $region48: #{tpu_custom_call.1} parent=1 // pred_region
      _
    $region49: #{tpu_custom_call.1} parent=1 // pred_fallthru
      _
    %v46 = vld [vmem:[%s0] sm:$0xff]
    %v47 = vld [vmem:[%s1] sm:$0xff]
    %v48 = vld [vmem:[%s1 + $0x8] sm:$0xff]
    %v49 = vld [vmem:[%s1 + $0x10] sm:$0xff]
    %v50 = vld [vmem:[%s1 + $0x18] sm:$0xff]
    %v51 = vld [vmem:[%s1 + $0x20] sm:$0xff]
    %v52 = vld [vmem:[%s1 + $0x28] sm:$0xff]
    %v53 = vld [vmem:[%s1 + $0x30] sm:$0xff]
    %v54 = vld [vmem:[%s1 + $0x38] sm:$0xff]
    %v55 = vld [vmem:[%s1 + $0x40] sm:$0xff]
    %v56 = vld [vmem:[%s1 + $0x48] sm:$0xff]
    %v57 = vld [vmem:[%s1 + $0x50] sm:$0xff]
    %v58 = vld [vmem:[%s1 + $0x58] sm:$0xff]
    %v59 = vld [vmem:[%s1 + $0x60] sm:$0xff]
    %v60 = vld [vmem:[%s1 + $0x68] sm:$0xff]
    %v61 = vld [vmem:[%s1 + $0x70] sm:$0xff]
    %v62 = vld [vmem:[%s1 + $0x78] sm:$0xff]
    %v63 = vld [vmem:[%s2] sm:$0x1]
    %v65 = vlaneseq
    %v66 = vshrl.u32 %v65, 7
    %v67 = vsub.s32 0, %v66
    %v68 = vrot.slane %v63, %v67
    %70 = vmatprep.subr.mxu0 0.0
    %71 = vmatpush1.msra.mxu0 %v47
    %72 = vmatprep.subr.mxu0 0.0
    %73 = vmatpush1.msra.mxu0 %v48
    %74 = vmatprep.subr.mxu0 0.0
    %75 = vmatpush1.msra.mxu0 %v49
    %76 = vmatprep.subr.mxu0 0.0
    %77 = vmatpush1.msra.mxu0 %v50
    %78 = vmatprep.subr.mxu0 0.0
    %79 = vmatpush1.msra.mxu0 %v51
    %80 = vmatprep.subr.mxu0 0.0
    %81 = vmatpush1.msra.mxu0 %v52
    %82 = vmatprep.subr.mxu0 0.0
    %83 = vmatpush1.msra.mxu0 %v53
    %84 = vmatprep.subr.mxu0 0.0
    %85 = vmatpush1.msra.mxu0 %v54
    %86 = vmatprep.subr.mxu0 0.0
    %87 = vmatpush1.msra.mxu0 %v55
    %88 = vmatprep.subr.mxu0 0.0
    %89 = vmatpush1.msra.mxu0 %v56
    %90 = vmatprep.subr.mxu0 0.0
    %91 = vmatpush1.msra.mxu0 %v57
    %92 = vmatprep.subr.mxu0 0.0
    %93 = vmatpush1.msra.mxu0 %v58
    %94 = vmatprep.subr.mxu0 0.0
    %95 = vmatpush1.msra.mxu0 %v59
    %96 = vmatprep.subr.mxu0 0.0
    %97 = vmatpush1.msra.mxu0 %v60
    %98 = vmatprep.subr.mxu0 0.0
    %99 = vmatpush1.msra.mxu0 %v61
    %100 = vmatprep.subr.mxu0 0.0
    %101 = vmatpush1.msra.mxu0 %v62
    %102 = vmatprep.subr.mxu0 0.0
    %103 = vmatpush1.msra.mxu0 0.0
    %104 = vmatprep.subr.mxu0 0.0
    %105 = vmatpush1.msra.mxu0 0.0
    %106 = vmatprep.subr.mxu0 0.0
    %107 = vmatpush1.msra.mxu0 0.0
    %108 = vmatprep.subr.mxu0 0.0
    %109 = vmatpush1.msra.mxu0 0.0
    %110 = vmatprep.subr.mxu0 0.0
    %111 = vmatpush1.msra.mxu0 0.0
    %112 = vmatprep.subr.mxu0 0.0
    %113 = vmatpush1.msra.mxu0 0.0
    %114 = vmatprep.subr.mxu0 0.0
    %115 = vmatpush1.msra.mxu0 0.0
    %116 = vmatprep.subr.mxu0 0.0
    %117 = vmatpush1.msra.mxu0 0.0
    %118 = vmatprep.subr.mxu0 0.0
    %119 = vmatpush1.msra.mxu0 0.0
    %120 = vmatprep.subr.mxu0 0.0
    %121 = vmatpush1.msra.mxu0 0.0
    %122 = vmatprep.subr.mxu0 0.0
    %123 = vmatpush1.msra.mxu0 0.0
    %124 = vmatprep.subr.mxu0 0.0
    %125 = vmatpush1.msra.mxu0 0.0
    %126 = vmatprep.subr.mxu0 0.0
    %127 = vmatpush1.msra.mxu0 0.0
    %128 = vmatprep.subr.mxu0 0.0
    %129 = vmatpush1.msra.mxu0 0.0
    %130 = vmatprep.subr.mxu0 0.0
    %131 = vmatpush1.msra.mxu0 0.0
    %132 = vmatprep.subr.mxu0 0.0
    %133 = vmatpush1.msra.mxu0 0.0
    %134 = vmatprep.mubr.f32.mxu0 0.0
    %135 = vmatmul.mubr.f32.gmra.mrb[0].mxu0 %v46
    %v136 = vpop.f32.mrb[0].mxu0
    %v137 = vadd.f32 %v68, %v136
    %v138 = vpop.f32.mrb[0].mxu0
    %139 = vdwg.mxu0
    %v140 = vmax.f32 %v137, 0.0
    %v141 = vld [vmem:[%s3] sm:$0xff]
    %v142 = vld [vmem:[%s3 + $0x8] sm:$0xff]
    %v143 = vld [vmem:[%s3 + $0x10] sm:$0xff]
    %v144 = vld [vmem:[%s3 + $0x18] sm:$0xff]
    %v145 = vld [vmem:[%s3 + $0x20] sm:$0xff]
    %v146 = vld [vmem:[%s3 + $0x28] sm:$0xff]
    %v147 = vld [vmem:[%s3 + $0x30] sm:$0xff]
    %v148 = vld [vmem:[%s3 + $0x38] sm:$0xff]
    %v149 = vld [vmem:[%s3 + $0x40] sm:$0xff]
    %v150 = vld [vmem:[%s3 + $0x48] sm:$0xff]
    %v151 = vld [vmem:[%s4] sm:$0x1]
    %v153 = vlaneseq
    %v154 = vshrl.u32 %v153, 7
    %v155 = vsub.s32 0, %v154
    %v156 = vrot.slane %v151, %v155
    %vm158 = vcmask 654336
    %v160 = vsel %vm158, %v140, 0
    %162 = vmatprep.subr.mxu0 0.0
    %163 = vmatpush1.msra.mxu0 %v141
    %164 = vmatprep.subr.mxu0 0.0
    %165 = vmatpush1.msra.mxu0 %v142
    %166 = vmatprep.subr.mxu0 0.0
    %167 = vmatpush1.msra.mxu0 %v143
    %168 = vmatprep.subr.mxu0 0.0
    %169 = vmatpush1.msra.mxu0 %v144
    %170 = vmatprep.subr.mxu0 0.0
    %171 = vmatpush1.msra.mxu0 %v145
    %172 = vmatprep.subr.mxu0 0.0
    %173 = vmatpush1.msra.mxu0 %v146
    %174 = vmatprep.subr.mxu0 0.0
    %175 = vmatpush1.msra.mxu0 %v147
    %176 = vmatprep.subr.mxu0 0.0
    %177 = vmatpush1.msra.mxu0 %v148
    %178 = vmatprep.subr.mxu0 0.0
    %179 = vmatpush1.msra.mxu0 %v149
    %180 = vmatprep.subr.mxu0 0.0
    %181 = vmatpush1.msra.mxu0 %v150
    %182 = vmatprep.subr.mxu0 0.0
    %183 = vmatpush1.msra.mxu0 0.0
    %184 = vmatprep.subr.mxu0 0.0
    %185 = vmatpush1.msra.mxu0 0.0
    %186 = vmatprep.subr.mxu0 0.0
    %187 = vmatpush1.msra.mxu0 0.0
    %188 = vmatprep.subr.mxu0 0.0
    %189 = vmatpush1.msra.mxu0 0.0
    %190 = vmatprep.subr.mxu0 0.0
    %191 = vmatpush1.msra.mxu0 0.0
    %192 = vmatprep.subr.mxu0 0.0
    %193 = vmatpush1.msra.mxu0 0.0
    %194 = vmatprep.subr.mxu0 0.0
    %195 = vmatpush1.msra.mxu0 0.0
    %196 = vmatprep.subr.mxu0 0.0
    %197 = vmatpush1.msra.mxu0 0.0
    %198 = vmatprep.subr.mxu0 0.0
    %199 = vmatpush1.msra.mxu0 0.0
    %200 = vmatprep.subr.mxu0 0.0
    %201 = vmatpush1.msra.mxu0 0.0
    %202 = vmatprep.subr.mxu0 0.0
    %203 = vmatpush1.msra.mxu0 0.0
    %204 = vmatprep.subr.mxu0 0.0
    %205 = vmatpush1.msra.mxu0 0.0
    %206 = vmatprep.subr.mxu0 0.0
    %207 = vmatpush1.msra.mxu0 0.0
    %208 = vmatprep.subr.mxu0 0.0
    %209 = vmatpush1.msra.mxu0 0.0
    %210 = vmatprep.subr.mxu0 0.0
    %211 = vmatpush1.msra.mxu0 0.0
    %212 = vmatprep.subr.mxu0 0.0
    %213 = vmatpush1.msra.mxu0 0.0
    %214 = vmatprep.subr.mxu0 0.0
    %215 = vmatpush1.msra.mxu0 0.0
    %216 = vmatprep.subr.mxu0 0.0
    %217 = vmatpush1.msra.mxu0 0.0
    %218 = vmatprep.subr.mxu0 0.0
    %219 = vmatpush1.msra.mxu0 0.0
    %220 = vmatprep.subr.mxu0 0.0
    %221 = vmatpush1.msra.mxu0 0.0
    %222 = vmatprep.subr.mxu0 0.0
    %223 = vmatpush1.msra.mxu0 0.0
    %224 = vmatprep.subr.mxu0 0.0
    %225 = vmatpush1.msra.mxu0 0.0
    %226 = vmatprep.mubr.f32.mxu0 0.0
    %227 = vmatmul.mubr.f32.gmra.mrb[0].mxu0 %v160
    %v228 = vpop.f32.mrb[0].mxu0
    %v229 = vadd.f32 %v156, %v228
    %v230 = vpop.f32.mrb[0].mxu0
    %231 = vdwg.mxu0
    %v232 = vmax.f32 %v229, 0.0
    %v233 = vld [vmem:[%s5] sm:$0xff]
    %v234 = vld [vmem:[%s5 + $0x8] sm:$0xff]
    %v235 = vld [vmem:[%s5 + $0x10] sm:$0xff]
    %v236 = vld [vmem:[%s5 + $0x18] sm:$0xff]
    %v237 = vld [vmem:[%s5 + $0x20] sm:$0xff]
    %v238 = vld [vmem:[%s5 + $0x28] sm:$0xff]
    %v239 = vld [vmem:[%s5 + $0x30] sm:$0xff]
    %v240 = vld [vmem:[%s5 + $0x38] sm:$0xff]
    %v241 = vld [vmem:[%s5 + $0x40] sm:$0xff]
    %v242 = vld [vmem:[%s5 + $0x48] sm:$0xff]
    %v243 = vld [vmem:[%s6] sm:$0x1]
    %v245 = vlaneseq
    %v246 = vshrl.u32 %v245, 7
    %v247 = vsub.s32 0, %v246
    %v248 = vrot.slane %v243, %v247
    %v251 = vsel %vm158, %v232, 0
    %253 = vmatprep.subr.mxu0 0.0
    %254 = vmatpush1.msra.mxu0 %v233
    %255 = vmatprep.subr.mxu0 0.0
    %256 = vmatpush1.msra.mxu0 %v234
    %257 = vmatprep.subr.mxu0 0.0
    %258 = vmatpush1.msra.mxu0 %v235
    %259 = vmatprep.subr.mxu0 0.0
    %260 = vmatpush1.msra.mxu0 %v236
    %261 = vmatprep.subr.mxu0 0.0
    %262 = vmatpush1.msra.mxu0 %v237
    %263 = vmatprep.subr.mxu0 0.0
    %264 = vmatpush1.msra.mxu0 %v238
    %265 = vmatprep.subr.mxu0 0.0
    %266 = vmatpush1.msra.mxu0 %v239
    %267 = vmatprep.subr.mxu0 0.0
    %268 = vmatpush1.msra.mxu0 %v240
    %269 = vmatprep.subr.mxu0 0.0
    %270 = vmatpush1.msra.mxu0 %v241
    %271 = vmatprep.subr.mxu0 0.0
    %272 = vmatpush1.msra.mxu0 %v242
    %273 = vmatprep.subr.mxu0 0.0
    %274 = vmatpush1.msra.mxu0 0.0
    %275 = vmatprep.subr.mxu0 0.0
    %276 = vmatpush1.msra.mxu0 0.0
    %277 = vmatprep.subr.mxu0 0.0
    %278 = vmatpush1.msra.mxu0 0.0
    %279 = vmatprep.subr.mxu0 0.0
    %280 = vmatpush1.msra.mxu0 0.0
    %281 = vmatprep.subr.mxu0 0.0
    %282 = vmatpush1.msra.mxu0 0.0
    %283 = vmatprep.subr.mxu0 0.0
    %284 = vmatpush1.msra.mxu0 0.0
    %285 = vmatprep.subr.mxu0 0.0
    %286 = vmatpush1.msra.mxu0 0.0
    %287 = vmatprep.subr.mxu0 0.0
    %288 = vmatpush1.msra.mxu0 0.0
    %289 = vmatprep.subr.mxu0 0.0
    %290 = vmatpush1.msra.mxu0 0.0
    %291 = vmatprep.subr.mxu0 0.0
    %292 = vmatpush1.msra.mxu0 0.0
    %293 = vmatprep.subr.mxu0 0.0
    %294 = vmatpush1.msra.mxu0 0.0
    %295 = vmatprep.subr.mxu0 0.0
    %296 = vmatpush1.msra.mxu0 0.0
    %297 = vmatprep.subr.mxu0 0.0
    %298 = vmatpush1.msra.mxu0 0.0
    %299 = vmatprep.subr.mxu0 0.0
    %300 = vmatpush1.msra.mxu0 0.0
    %301 = vmatprep.subr.mxu0 0.0
    %302 = vmatpush1.msra.mxu0 0.0
    %303 = vmatprep.subr.mxu0 0.0
    %304 = vmatpush1.msra.mxu0 0.0
    %305 = vmatprep.subr.mxu0 0.0
    %306 = vmatpush1.msra.mxu0 0.0
    %307 = vmatprep.subr.mxu0 0.0
    %308 = vmatpush1.msra.mxu0 0.0
    %309 = vmatprep.subr.mxu0 0.0
    %310 = vmatpush1.msra.mxu0 0.0
    %311 = vmatprep.subr.mxu0 0.0
    %312 = vmatpush1.msra.mxu0 0.0
    %313 = vmatprep.subr.mxu0 0.0
    %314 = vmatpush1.msra.mxu0 0.0
    %315 = vmatprep.subr.mxu0 0.0
    %316 = vmatpush1.msra.mxu0 0.0
    %317 = vmatprep.mubr.f32.mxu0 0.0
    %318 = vmatmul.mubr.f32.gmra.mrb[0].mxu0 %v251
    %v319 = vpop.f32.mrb[0].mxu0
    %v320 = vadd.f32 %v248, %v319
    %v321 = vpop.f32.mrb[0].mxu0
    %322 = vdwg.mxu0
    %v323 = vld [vmem:[%s7] sm:$0x1]
    %v325 = vlaneseq
    %v326 = vshrl.u32 %v325, 7
    %v327 = vsub.s32 0, %v326
    %v328 = vrot.slane %v323, %v327
    %v330 = vmul.f32 %v320, %v328
    %v331 = vmax.f32 %v320, 0.0
    %v332 = vld [vmem:[%s8] sm:$0xff]
    %v333 = vld [vmem:[%s8 + $0x8] sm:$0xff]
    %v334 = vld [vmem:[%s8 + $0x10] sm:$0xff]
    %v335 = vld [vmem:[%s8 + $0x18] sm:$0xff]
    %v336 = vld [vmem:[%s8 + $0x20] sm:$0xff]
    %v337 = vld [vmem:[%s8 + $0x28] sm:$0xff]
    %v338 = vld [vmem:[%s8 + $0x30] sm:$0xff]
    %v339 = vld [vmem:[%s8 + $0x38] sm:$0xff]
    %vm340 = vcmask 523264
    %v342 = vsel %vm340, %v331, 0
    %344 = vmatprep.subr.mxu0 0.0
    %345 = vmatpush1.msra.mxu0 %v332
    %346 = vmatprep.subr.mxu0 0.0
    %347 = vmatpush1.msra.mxu0 %v333
    %348 = vmatprep.subr.mxu0 0.0
    %349 = vmatpush1.msra.mxu0 %v334
    %350 = vmatprep.subr.mxu0 0.0
    %351 = vmatpush1.msra.mxu0 %v335
    %352 = vmatprep.subr.mxu0 0.0
    %353 = vmatpush1.msra.mxu0 %v336
    %354 = vmatprep.subr.mxu0 0.0
    %355 = vmatpush1.msra.mxu0 %v337
    %356 = vmatprep.subr.mxu0 0.0
    %357 = vmatpush1.msra.mxu0 %v338
    %358 = vmatprep.subr.mxu0 0.0
    %359 = vmatpush1.msra.mxu0 %v339
    %360 = vmatprep.subr.mxu0 0.0
    %361 = vmatpush1.msra.mxu0 0.0
    %362 = vmatprep.subr.mxu0 0.0
    %363 = vmatpush1.msra.mxu0 0.0
    %364 = vmatprep.subr.mxu0 0.0
    %365 = vmatpush1.msra.mxu0 0.0
    %366 = vmatprep.subr.mxu0 0.0
    %367 = vmatpush1.msra.mxu0 0.0
    %368 = vmatprep.subr.mxu0 0.0
    %369 = vmatpush1.msra.mxu0 0.0
    %370 = vmatprep.subr.mxu0 0.0
    %371 = vmatpush1.msra.mxu0 0.0
    %372 = vmatprep.subr.mxu0 0.0
    %373 = vmatpush1.msra.mxu0 0.0
    %374 = vmatprep.subr.mxu0 0.0
    %375 = vmatpush1.msra.mxu0 0.0
    %376 = vmatprep.subr.mxu0 0.0
    %377 = vmatpush1.msra.mxu0 0.0
    %378 = vmatprep.subr.mxu0 0.0
    %379 = vmatpush1.msra.mxu0 0.0
    %380 = vmatprep.subr.mxu0 0.0
    %381 = vmatpush1.msra.mxu0 0.0
    %382 = vmatprep.subr.mxu0 0.0
    %383 = vmatpush1.msra.mxu0 0.0
    %384 = vmatprep.subr.mxu0 0.0
    %385 = vmatpush1.msra.mxu0 0.0
    %386 = vmatprep.subr.mxu0 0.0
    %387 = vmatpush1.msra.mxu0 0.0
    %388 = vmatprep.subr.mxu0 0.0
    %389 = vmatpush1.msra.mxu0 0.0
    %390 = vmatprep.subr.mxu0 0.0
    %391 = vmatpush1.msra.mxu0 0.0
    %392 = vmatprep.subr.mxu0 0.0
    %393 = vmatpush1.msra.mxu0 0.0
    %394 = vmatprep.subr.mxu0 0.0
    %395 = vmatpush1.msra.mxu0 0.0
    %396 = vmatprep.subr.mxu0 0.0
    %397 = vmatpush1.msra.mxu0 0.0
    %398 = vmatprep.subr.mxu0 0.0
    %399 = vmatpush1.msra.mxu0 0.0
    %400 = vmatprep.subr.mxu0 0.0
    %401 = vmatpush1.msra.mxu0 0.0
    %402 = vmatprep.subr.mxu0 0.0
    %403 = vmatpush1.msra.mxu0 0.0
    %404 = vmatprep.subr.mxu0 0.0
    %405 = vmatpush1.msra.mxu0 0.0
    %406 = vmatprep.subr.mxu0 0.0
    %407 = vmatpush1.msra.mxu0 0.0
    %408 = vmatprep.mubr.f32.mxu0 0.0
    %409 = vmatmul.mubr.f32.gmra.mrb[0].mxu0 %v342
    %v410 = vpop.f32.mrb[0].mxu0
    %v411 = vadd.f32 0.0, %v410
    %v412 = vpop.f32.mrb[0].mxu0
    %413 = vdwg.mxu0
    %v414 = vadd.f32 %v330, %v411
    %v415 = vld [vmem:[%s9] sm:$0x1]
    %v417 = vlaneseq
    %v418 = vshrl.u32 %v417, 7
    %v419 = vsub.s32 0, %v418
    %v420 = vrot.slane %v415, %v419
    %v422 = vadd.f32 %v414, %v420
    %v423 = vld [vmem:[%s10] sm:$0x1]
    %v425 = vlaneseq
    %v426 = vshrl.u32 %v425, 7
    %v427 = vsub.s32 0, %v426
    %v428 = vrot.slane %v423, %v427
    %v430 = vadd.f32 %v428, %v422
    %v431 = vld [vmem:[%s11] sm:$0xff]
    %v432 = vld [vmem:[%s11 + $0x8] sm:$0xff]
    %v433 = vld [vmem:[%s11 + $0x10] sm:$0xff]
    %v434 = vld [vmem:[%s11 + $0x18] sm:$0xff]
    %v435 = vld [vmem:[%s11 + $0x20] sm:$0xff]
    %v436 = vld [vmem:[%s11 + $0x28] sm:$0xff]
    %v437 = vld [vmem:[%s11 + $0x30] sm:$0xff]
    %v438 = vld [vmem:[%s11 + $0x38] sm:$0xff]
    %v440 = vsel %vm340, %v320, 0
    %442 = vmatprep.subr.mxu0 0.0
    %443 = vmatpush1.msra.mxu0 %v431
    %444 = vmatprep.subr.mxu0 0.0
    %445 = vmatpush1.msra.mxu0 %v432
    %446 = vmatprep.subr.mxu0 0.0
    %447 = vmatpush1.msra.mxu0 %v433
    %448 = vmatprep.subr.mxu0 0.0
    %449 = vmatpush1.msra.mxu0 %v434
    %450 = vmatprep.subr.mxu0 0.0
    %451 = vmatpush1.msra.mxu0 %v435
    %452 = vmatprep.subr.mxu0 0.0
    %453 = vmatpush1.msra.mxu0 %v436
    %454 = vmatprep.subr.mxu0 0.0
    %455 = vmatpush1.msra.mxu0 %v437
    %456 = vmatprep.subr.mxu0 0.0
    %457 = vmatpush1.msra.mxu0 %v438
    %458 = vmatprep.subr.mxu0 0.0
    %459 = vmatpush1.msra.mxu0 0.0
    %460 = vmatprep.subr.mxu0 0.0
    %461 = vmatpush1.msra.mxu0 0.0
    %462 = vmatprep.subr.mxu0 0.0
    %463 = vmatpush1.msra.mxu0 0.0
    %464 = vmatprep.subr.mxu0 0.0
    %465 = vmatpush1.msra.mxu0 0.0
    %466 = vmatprep.subr.mxu0 0.0
    %467 = vmatpush1.msra.mxu0 0.0
    %468 = vmatprep.subr.mxu0 0.0
    %469 = vmatpush1.msra.mxu0 0.0
    %470 = vmatprep.subr.mxu0 0.0
    %471 = vmatpush1.msra.mxu0 0.0
    %472 = vmatprep.subr.mxu0 0.0
    %473 = vmatpush1.msra.mxu0 0.0
    %474 = vmatprep.subr.mxu0 0.0
    %475 = vmatpush1.msra.mxu0 0.0
    %476 = vmatprep.subr.mxu0 0.0
    %477 = vmatpush1.msra.mxu0 0.0
    %478 = vmatprep.subr.mxu0 0.0
    %479 = vmatpush1.msra.mxu0 0.0
    %480 = vmatprep.subr.mxu0 0.0
    %481 = vmatpush1.msra.mxu0 0.0
    %482 = vmatprep.subr.mxu0 0.0
    %483 = vmatpush1.msra.mxu0 0.0
    %484 = vmatprep.subr.mxu0 0.0
    %485 = vmatpush1.msra.mxu0 0.0
    %486 = vmatprep.subr.mxu0 0.0
    %487 = vmatpush1.msra.mxu0 0.0
    %488 = vmatprep.subr.mxu0 0.0
    %489 = vmatpush1.msra.mxu0 0.0
    %490 = vmatprep.subr.mxu0 0.0
    %491 = vmatpush1.msra.mxu0 0.0
    %492 = vmatprep.subr.mxu0 0.0
    %493 = vmatpush1.msra.mxu0 0.0
    %494 = vmatprep.subr.mxu0 0.0
    %495 = vmatpush1.msra.mxu0 0.0
    %496 = vmatprep.subr.mxu0 0.0
    %497 = vmatpush1.msra.mxu0 0.0
    %498 = vmatprep.subr.mxu0 0.0
    %499 = vmatpush1.msra.mxu0 0.0
    %500 = vmatprep.subr.mxu0 0.0
    %501 = vmatpush1.msra.mxu0 0.0
    %502 = vmatprep.subr.mxu0 0.0
    %503 = vmatpush1.msra.mxu0 0.0
    %504 = vmatprep.subr.mxu0 0.0
    %505 = vmatpush1.msra.mxu0 0.0
    %506 = vmatprep.mubr.f32.mxu0 0.0
    %507 = vmatmul.mubr.f32.gmra.mrb[0].mxu0 %v440
    %v508 = vpop.f32.mrb[0].mxu0
    %v509 = vadd.f32 0.0, %v508
    %v510 = vpop.f32.mrb[0].mxu0
    %511 = vdwg.mxu0
    %v512 = vmax.f32 %v509, 0.0
    %513 = vst [vmem:[#allocation2] sm:$0xff] %v512
    %v515 = vsel %vm340, %v430, 0
    %517 = vmatprep.subr.mxu0 0.0
    %518 = vmatpush1.msra.mxu0 %v431
    %519 = vmatprep.subr.mxu0 0.0
    %520 = vmatpush1.msra.mxu0 %v432
    %521 = vmatprep.subr.mxu0 0.0
    %522 = vmatpush1.msra.mxu0 %v433
    %523 = vmatprep.subr.mxu0 0.0
    %524 = vmatpush1.msra.mxu0 %v434
    %525 = vmatprep.subr.mxu0 0.0
    %526 = vmatpush1.msra.mxu0 %v435
    %527 = vmatprep.subr.mxu0 0.0
    %528 = vmatpush1.msra.mxu0 %v436
    %529 = vmatprep.subr.mxu0 0.0
    %530 = vmatpush1.msra.mxu0 %v437
    %531 = vmatprep.subr.mxu0 0.0
    %532 = vmatpush1.msra.mxu0 %v438
    %533 = vmatprep.subr.mxu0 0.0
    %534 = vmatpush1.msra.mxu0 0.0
    %535 = vmatprep.subr.mxu0 0.0
    %536 = vmatpush1.msra.mxu0 0.0
    %537 = vmatprep.subr.mxu0 0.0
    %538 = vmatpush1.msra.mxu0 0.0
    %539 = vmatprep.subr.mxu0 0.0
    %540 = vmatpush1.msra.mxu0 0.0
    %541 = vmatprep.subr.mxu0 0.0
    %542 = vmatpush1.msra.mxu0 0.0
    %543 = vmatprep.subr.mxu0 0.0
    %544 = vmatpush1.msra.mxu0 0.0
    %545 = vmatprep.subr.mxu0 0.0
    %546 = vmatpush1.msra.mxu0 0.0
    %547 = vmatprep.subr.mxu0 0.0
    %548 = vmatpush1.msra.mxu0 0.0
    %549 = vmatprep.subr.mxu0 0.0
    %550 = vmatpush1.msra.mxu0 0.0
    %551 = vmatprep.subr.mxu0 0.0
    %552 = vmatpush1.msra.mxu0 0.0
    %553 = vmatprep.subr.mxu0 0.0
    %554 = vmatpush1.msra.mxu0 0.0
    %555 = vmatprep.subr.mxu0 0.0
    %556 = vmatpush1.msra.mxu0 0.0
    %557 = vmatprep.subr.mxu0 0.0
    %558 = vmatpush1.msra.mxu0 0.0
    %559 = vmatprep.subr.mxu0 0.0
    %560 = vmatpush1.msra.mxu0 0.0
    %561 = vmatprep.subr.mxu0 0.0
    %562 = vmatpush1.msra.mxu0 0.0
    %563 = vmatprep.subr.mxu0 0.0
    %564 = vmatpush1.msra.mxu0 0.0
    %565 = vmatprep.subr.mxu0 0.0
    %566 = vmatpush1.msra.mxu0 0.0
    %567 = vmatprep.subr.mxu0 0.0
    %568 = vmatpush1.msra.mxu0 0.0
    %569 = vmatprep.subr.mxu0 0.0
    %570 = vmatpush1.msra.mxu0 0.0
    %571 = vmatprep.subr.mxu0 0.0
    %572 = vmatpush1.msra.mxu0 0.0
    %573 = vmatprep.subr.mxu0 0.0
    %574 = vmatpush1.msra.mxu0 0.0
    %575 = vmatprep.subr.mxu0 0.0
    %576 = vmatpush1.msra.mxu0 0.0
    %577 = vmatprep.subr.mxu0 0.0
    %578 = vmatpush1.msra.mxu0 0.0
    %579 = vmatprep.subr.mxu0 0.0
    %580 = vmatpush1.msra.mxu0 0.0
    %581 = vmatprep.mubr.f32.mxu0 0.0
    %582 = vmatmul.mubr.f32.gmra.mrb[0].mxu0 %v515
    %v583 = vpop.f32.mrb[0].mxu0
    %v584 = vadd.f32 0.0, %v583
    %v585 = vpop.f32.mrb[0].mxu0
    %586 = vdwg.mxu0
    %v587 = vmax.f32 %v584, 0.0
    %588 = vst [vmem:[#allocation4] sm:$0xff] %v587
    %589 = vst.msk [vmem:[#allocation6] sm:$0xff] %vm340, %v422
    // Predicated region
    $region50: #{tpu_custom_call.1} parent=1 // pred_check
      _
    $region51: #{tpu_custom_call.1} parent=1 // pred_check_branch
      %591 = sbr.rel (0) target = $region53
    $region52: #{tpu_custom_call.1} parent=1 // pred_region
      %s593 = ssub.s32 128, 128
      %594 = vsyncadd [#allocation3], %s593
      %s596 = sshll.u32 [#allocation2], 4
      %s597 = int_to_ptr.vmem [resolvable:$true] %s596
      %599 = dma.vmem_to_hbm [thread:$0]  %s597, 128, %s12, [#allocation3]
    $region53: #{tpu_custom_call.1} parent=1 // pred_fallthru
      _
    // Predicated region
    $region54: #{tpu_custom_call.1} parent=1 // pred_check
      _
    $region55: #{tpu_custom_call.1} parent=1 // pred_check_branch
      %601 = sbr.rel (0) target = $region57
    $region56: #{tpu_custom_call.1} parent=1 // pred_region
      %s603 = ssub.s32 128, 128
      %604 = vsyncadd [#allocation5], %s603
      %s606 = sshll.u32 [#allocation4], 4
      %s607 = int_to_ptr.vmem [resolvable:$true] %s606
      %609 = dma.vmem_to_hbm [thread:$0]  %s607, 128, %s13, [#allocation5]
    $region57: #{tpu_custom_call.1} parent=1 // pred_fallthru
      _
    // Predicated region
    $region58: #{tpu_custom_call.1} parent=1 // pred_check
      _
    $region59: #{tpu_custom_call.1} parent=1 // pred_check_branch
      %611 = sbr.rel (0) target = $region61
    $region60: #{tpu_custom_call.1} parent=1 // pred_region
      %s613 = ssub.s32 128, 128
      %614 = vsyncadd [#allocation5], %s613
      %s616 = sshll.u32 [#allocation6], 4
      %s617 = int_to_ptr.vmem [resolvable:$true] %s616
      %619 = dma.vmem_to_hbm [thread:$0]  %s617, 128, %s14, [#allocation5]
    $region61: #{tpu_custom_call.1} parent=1 // pred_fallthru
      _
    // Predicated region
    $region62: #{tpu_custom_call.1} parent=1 // pred_check
      _
    $region63: #{tpu_custom_call.1} parent=1 // pred_check_branch
      %621 = sbr.rel (0) target = $region65
    $region64: #{tpu_custom_call.1} parent=1 // pred_region
      %622 = dma.done [#allocation3], 128
    $region65: #{tpu_custom_call.1} parent=1 // pred_fallthru
      _
    // Predicated region
    $region66: #{tpu_custom_call.1} parent=1 // pred_check
      _
    $region67: #{tpu_custom_call.1} parent=1 // pred_check_branch
      %624 = sbr.rel (0) target = $region69
    $region68: #{tpu_custom_call.1} parent=1 // pred_region
      %625 = dma.done [#allocation5], 128
    $region69: #{tpu_custom_call.1} parent=1 // pred_fallthru
      _
    // Predicated region
    $region70: #{tpu_custom_call.1} parent=1 // pred_check
      _
    $region71: #{tpu_custom_call.1} parent=1 // pred_check_branch
      %627 = sbr.rel (0) target = $region73
    $region72: #{tpu_custom_call.1} parent=1 // pred_region
      %628 = dma.done [#allocation5], 128
    $region73: #{tpu_custom_call.1} parent=1 // pred_fallthru
      _
    %629 = vsyncpa [#allocation3], 1
    %630 = vsyncpa [#allocation5], 1

</llo_original>
